<compile_context>
chip_gen: v5e
topology: v5e:2x2
jax: 0.10.0
libtpu: 0.0.40
codegen_flags: <defaults>
</compile_context>

<pallas_src>
import functools

import jax
import jax.numpy as jnp
from jax.experimental import pallas as pl
from jax.experimental.pallas import tpu as pltpu


def block_memory_kernel(hw, q_ref, mem_ref, qhat_ref, s_ref, rmax_ref, wmax_ref):
    """Grid = (batch, hw_tiles).  q_ref/qhat_ref: [d, T]; mem_ref: [m, d];
    s_ref/rmax_ref/wmax_ref: per-batch partial accumulators ([m,d]/[m,1]/[m,1])
    resident across the hw-tile axis."""
    ti = pl.program_id(1)

    q = q_ref[...].astype(jnp.float32)        # [d, T]   (lane axis = pixels)
    mem = mem_ref[...].astype(jnp.float32)    # [m, d]
    num_mem, _ = mem.shape
    t_hw = q.shape[1]

    # score_t[i, j] = <mem_i, pixel_j>  ->  [m, T]  (lane-dense, no transpose)
    st = jax.lax.dot_general(
        mem, q, dimension_numbers=(((1,), (0,)), ((), ())),
        preferred_element_type=jnp.float32)

    # ---------------- read path: per-pixel softmax over memory items ----------------
    col_max = jnp.max(st, axis=0, keepdims=True)                  # [1, T]
    e = jnp.exp(st - col_max)                                      # [m, T]
    z = jnp.sum(e, axis=0, keepdims=True)                          # [1, T]
    # softmax(st)[i,j] < 1/m  <=>  e[i,j] < z[j]/m ; the softmax denominator
    # cancels from the L1 re-normalization, so it is never materialized.
    keep = e >= z * jnp.float32(1.0 / num_mem)
    wkeep = jnp.where(keep, e, 0.0)
    l1 = jnp.maximum(jnp.sum(wkeep, axis=0, keepdims=True), 1e-12)  # [1, T]
    wn = wkeep * pl.reciprocal(l1, approx=True)                     # [m, T]
    # query_hat^T = mem^T @ wn -> [d, T]  (lane-dense output store)
    qhatT = jax.lax.dot_general(
        mem, wn, dimension_numbers=(((0,), (0,)), ((), ())),
        preferred_element_type=jnp.float32)
    qhat_ref[...] = qhatT.astype(qhat_ref.dtype)

    # ---------------- update path: per-batch online accumulation over hw tiles ------
    @pl.when(ti == 0)
    def _init():
        s_ref[...] = jnp.zeros_like(s_ref)
        rmax_ref[...] = jnp.full_like(rmax_ref, -jnp.inf)
        wmax_ref[...] = jnp.zeros_like(wmax_ref)

    # nearest memory item per pixel = argmax over m (first occurrence on ties)
    iota_m = jax.lax.broadcasted_iota(jnp.int32, st.shape, 0)
    nearest = jnp.min(jnp.where(st == col_max, iota_m, num_mem),
                      axis=0, keepdims=True)                        # [1, T]
    mask = (iota_m == nearest).astype(jnp.float32)                  # [m, T] one-hot/col

    tile_rmax = jnp.max(st, axis=1, keepdims=True)                  # [m, 1]
    new_rmax = jnp.maximum(rmax_ref[...], tile_rmax)
    alpha = jnp.exp(rmax_ref[...] - new_rmax)                       # rescale old partials

    # Factored exp: pm is one-hot per column with st == col_max on the kept
    # row, so only T exps are needed (instead of m*T).
    rmax_per_col = jnp.sum(mask * new_rmax, axis=0, keepdims=True)  # [1, T]
    pcol = jnp.exp(col_max - rmax_per_col)                          # [1, T]
    if hw % t_hw != 0:
        # Mask padded tail columns so they never contribute to the update.
        col_idx = ti * t_hw + jax.lax.broadcasted_iota(jnp.int32, (1, t_hw), 1)
        pcol = jnp.where(col_idx < hw, pcol, 0.0)
    pm = mask * pcol                                                # [m, T]

    wmax_ref[...] = jnp.maximum(wmax_ref[...] * alpha,
                                jnp.max(pm, axis=1, keepdims=True))
    # A @ B^T orientation (both contract the lane axis) -> MXU trans_b path.
    s_ref[...] = s_ref[...] * alpha + jax.lax.dot_general(
        pm, q, dimension_numbers=(((1,), (1,)), ((), ())),
        preferred_element_type=jnp.float32)                         # [m, d]
    rmax_ref[...] = new_rmax


def _pick_tile_hw(hw):
    """Pad h*w up to a multiple of 128, then take the largest tile in the
    128..8192 sweet spot that divides the padded extent (zero extra padding)."""
    hw128 = ((hw + 127) // 128) * 128
    for t in (8192, 4096, 2048, 1024, 512, 256, 128):
        if hw128 % t == 0:
            return t, hw128
    return 128, hw128  # unreachable: hw128 is always a multiple of 128


def block_memory_forward(query, mem):
    """query: [b, d, h, w] (NCHW); mem: [m, d] -> (query_hat [b,d,h,w], mem_update [m,d])."""
    b, d, h, w = query.shape
    m, d2 = mem.shape
    hw = h * w
    t_hw, hw_pad = _pick_tile_hw(hw)
    n_t = hw_pad // t_hw

    q3 = query.reshape(b, d, hw)                 # free, contiguous reshape (no HBM transpose)
    if hw_pad != hw:
        q3 = jnp.pad(q3, ((0, 0), (0, 0), (0, hw_pad - hw)))

    kernel = functools.partial(block_memory_kernel, hw)

    qhat3, s_part, rmax_part, wmax_part = pl.pallas_call(
        kernel,
        out_shape=(
            jax.ShapeDtypeStruct((b, d, hw_pad), query.dtype),   # qhat^T tiles (lane-dense)
            jax.ShapeDtypeStruct((b, m, d2), jnp.float32),       # per-batch weighted pixel sum
            jax.ShapeDtypeStruct((b, m, 1), jnp.float32),        # per-batch running row max
            jax.ShapeDtypeStruct((b, m, 1), jnp.float32),        # per-batch masked max weight
        ),
        grid_spec=pltpu.PrefetchScalarGridSpec(
            num_scalar_prefetch=0,
            grid=(b, n_t),
            in_specs=[
                pl.BlockSpec((None, d, t_hw), lambda bi, ti: (bi, 0, ti)),  # q tile, streamed
                pl.BlockSpec((m, d2), lambda bi, ti: (0, 0)),               # mem, resident
            ],
            out_specs=[
                pl.BlockSpec((None, d, t_hw), lambda bi, ti: (bi, 0, ti)),  # qhat tile
                pl.BlockSpec((None, m, d2), lambda bi, ti: (bi, 0, 0)),     # accumulators:
                pl.BlockSpec((None, m, 1), lambda bi, ti: (bi, 0, 0)),      # same block across
                pl.BlockSpec((None, m, 1), lambda bi, ti: (bi, 0, 0)),      # the hw-tile axis
            ],
        ),
        compiler_params=pltpu.CompilerParams(
            dimension_semantics=("parallel", "arbitrary"),   # batch -> both TCs on v7x
            vmem_limit_bytes=32 * 1024 * 1024,               # safe on v5e/v6e/v7x at T_HW<=8192
        ),
    )(q3, mem)

    if hw_pad != hw:
        qhat3 = qhat3[:, :, :hw]
    query_hat = qhat3.reshape(b, d, h, w)

    # ---- tiny cross-batch combine + L2 normalize (plain JAX, [b,m,d] sized) ----
    memf = mem.astype(jnp.float32)
    new_rmax = jnp.max(rmax_part, axis=0)                   # [m, 1]
    scale = jnp.exp(rmax_part - new_rmax)                   # [b, m, 1]
    s = jnp.sum(s_part * scale, axis=0)                     # [m, d]
    wmax = jnp.max(wmax_part * scale, axis=0)               # [m, 1]
    # Assigned test per batch BEFORE rescaling (robust to cross-batch exp underflow).
    # Caveat: within-batch score spreads > ~88 could still underflow wmax; keep a
    # counted-mask accumulator instead if that regime is ever possible.
    assigned = jnp.any(wmax_part > 0.0, axis=0)             # [m, 1]
    delta = s / jnp.maximum(wmax, 1e-30)
    cand = memf + delta
    l2 = jnp.sqrt(jnp.sum(cand * cand, axis=1, keepdims=True))
    mem_update = jnp.where(assigned, cand / jnp.maximum(l2, 1e-12), 0.0).astype(mem.dtype)

    return query_hat, mem_update


def _reference_forward(query, mem):
    """Pure-JAX replica of the PyTorch module (loose sanity check only)."""
    hi = jax.lax.Precision.HIGHEST
    b, d, h, w = query.shape
    m = mem.shape[0]
    n = b * h * w
    q2 = jnp.transpose(query, (0, 2, 3, 1)).reshape(n, d).astype(jnp.float32)
    memf = mem.astype(jnp.float32)

    score = jnp.dot(q2, memf.T, precision=hi)             # [n, m]
    s_mem = jax.nn.softmax(score, axis=1)
    s_query = jax.nn.softmax(score.T, axis=1)             # [m, n]

    thres = 1.0 / m
    sm = jnp.where(s_mem < thres, 0.0, s_mem)
    sm = sm / jnp.maximum(jnp.sum(jnp.abs(sm), axis=1, keepdims=True), 1e-12)
    qhat = jnp.dot(sm, memf, precision=hi)                # [n, d]
    qhat = jnp.transpose(qhat.reshape(b, h, w, d), (0, 3, 1, 2))

    nearest = jnp.argmax(s_mem, axis=1)                   # [n]
    mask = nearest[None, :] == jnp.arange(m)[:, None]     # [m, n]
    wsel = jnp.where(mask, s_query, 0.0)
    wmax = jnp.max(wsel, axis=1, keepdims=True)
    wnorm = wsel / jnp.maximum(wmax, 1e-30)
    delta = jnp.dot(wnorm, q2, precision=hi)              # [m, d]
    cand = memf + delta
    l2 = jnp.sqrt(jnp.sum(cand * cand, axis=1, keepdims=True))
    upd = cand / jnp.maximum(l2, 1e-12)
    upd = jnp.where(jnp.sum(mask, axis=1, keepdims=True) > 0, upd, 0.0)
    return qhat.astype(query.dtype), upd.astype(mem.dtype)


if __name__ == "__main__":
    # shapes consistent with the module: b=2, d=32, h=w=8, m=16
    b, d, h, w, m = 2, 32, 8, 8, 16
    key = jax.random.PRNGKey(0)
    kq, km = jax.random.split(key)
    query = jax.random.normal(kq, (b, d, h, w), dtype=jnp.float32)
    mem = jax.random.normal(km, (m, d), dtype=jnp.float32)

    query_hat, mem_update = jax.jit(block_memory_forward)(query, mem)
    jax.block_until_ready((query_hat, mem_update))

    assert query_hat.shape == (b, d, h, w)
    assert mem_update.shape == (m, d)
    assert bool(jnp.all(jnp.isfinite(query_hat)))
    assert bool(jnp.all(jnp.isfinite(mem_update)))

    # Loose sanity check vs. a pure-JAX replica of the PyTorch forward
    # (tolerance absorbs MXU f32-matmul / approx-reciprocal differences).
    ref_qhat, ref_upd = _reference_forward(query, mem)
    assert bool(jnp.allclose(query_hat, ref_qhat, atol=5e-2, rtol=5e-2))
    assert bool(jnp.allclose(mem_update, ref_upd, atol=5e-2, rtol=5e-2))

    print("KERNEL_OK")
</pallas_src>

<mosaic_0001>
module attributes {stable_mosaic.version = 11 : i64} {
  func.func @block_memory_kernel(%arg0: i32, %arg1: i32, %arg2: memref<1x32x128xf32, #tpu.memory_space<vmem>>, %arg3: memref<16x32xf32, #tpu.memory_space<vmem>>, %arg4: memref<1x32x128xf32, #tpu.memory_space<vmem>>, %arg5: memref<1x16x32xf32, #tpu.memory_space<vmem>>, %arg6: memref<1x16x1xf32, #tpu.memory_space<vmem>>, %arg7: memref<1x16x1xf32, #tpu.memory_space<vmem>>) attributes {dimension_semantics = [#tpu.dimension_semantics<parallel>, #tpu.dimension_semantics<arbitrary>], iteration_bounds = array<i64: 2, 1>, scalar_prefetch = 0 : i64, scratch_operands = 0 : i64, tpu.core_type = #tpu.core_type<tc>, window_params = [{transform_indices = @transform_0, window_bounds = array<i64: 1, 32, 128>}, {pipeline_mode = #tpu.pipeline_mode<synchronous>, transform_indices = @transform_1, window_bounds = array<i64: 16, 32>}, {transform_indices = @transform_2, window_bounds = array<i64: 1, 32, 128>}, {transform_indices = @transform_3, window_bounds = array<i64: 1, 16, 32>}, {transform_indices = @transform_4, window_bounds = array<i64: 1, 16, 1>}, {transform_indices = @transform_5, window_bounds = array<i64: 1, 16, 1>}]} {
    %c0 = arith.constant 0 : index
    %c0_0 = arith.constant 0 : index
    %c0_1 = arith.constant 0 : index
    %0 = vector.load %arg2[%c0, %c0_0, %c0_1] : memref<1x32x128xf32, #tpu.memory_space<vmem>>, vector<1x32x128xf32>
    %1 = vector.shape_cast %0 : vector<1x32x128xf32> to vector<32x128xf32>
    %c0_2 = arith.constant 0 : index
    %c0_3 = arith.constant 0 : index
    %2 = vector.load %arg3[%c0_2, %c0_3] : memref<16x32xf32, #tpu.memory_space<vmem>>, vector<16x32xf32>
    %cst = arith.constant dense<0.000000e+00> : vector<16x128xf32>
    %3 = tpu.matmul %2, %1, %cst {dimension_numbers = #tpu.dot_dimension_numbers<[1], [0], [0], [1], [0, 0, 1, 1], [], []>} : vector<16x32xf32>, vector<32x128xf32>, vector<16x128xf32> -> vector<16x128xf32>
    %cst_4 = arith.constant dense<0xFF800000> : vector<128xf32>
    %4 = vector.multi_reduction <maximumf>, %3, %cst_4 [0] : vector<16x128xf32> to vector<128xf32>
    %5 = vector.shape_cast %4 : vector<128xf32> to vector<1x128xf32>
    %6 = vector.broadcast %5 : vector<1x128xf32> to vector<16x128xf32>
    %7 = arith.subf %3, %6 : vector<16x128xf32>
    %8 = math.exp %7 : vector<16x128xf32>
    %cst_5 = arith.constant dense<0.000000e+00> : vector<128xf32>
    %9 = vector.multi_reduction <add>, %8, %cst_5 [0] : vector<16x128xf32> to vector<128xf32>
    %10 = vector.shape_cast %9 : vector<128xf32> to vector<1x128xf32>
    %cst_6 = arith.constant 6.250000e-02 : f32
    %11 = vector.broadcast %cst_6 : f32 to vector<1x128xf32>
    %12 = arith.mulf %10, %11 : vector<1x128xf32>
    %13 = vector.broadcast %12 : vector<1x128xf32> to vector<16x128xf32>
    %14 = arith.cmpf oge, %8, %13 : vector<16x128xf32>
    %cst_7 = arith.constant 0.000000e+00 : f32
    %15 = vector.broadcast %cst_7 : f32 to vector<16x128xf32>
    %16 = arith.select %14, %8, %15 : vector<16x128xi1>, vector<16x128xf32>
    %cst_8 = arith.constant dense<0.000000e+00> : vector<128xf32>
    %17 = vector.multi_reduction <add>, %16, %cst_8 [0] : vector<16x128xf32> to vector<128xf32>
    %18 = vector.shape_cast %17 : vector<128xf32> to vector<1x128xf32>
    %cst_9 = arith.constant 9.99999996E-13 : f32
    %19 = vector.broadcast %cst_9 : f32 to vector<1x128xf32>
    %20 = arith.maximumf %18, %19 : vector<1x128xf32>
    %21 = tpu.reciprocal %20 {approx = true} : vector<1x128xf32> -> vector<1x128xf32>
    %22 = vector.broadcast %21 : vector<1x128xf32> to vector<16x128xf32>
    %23 = arith.mulf %16, %22 : vector<16x128xf32>
    %cst_10 = arith.constant dense<0.000000e+00> : vector<32x128xf32>
    %24 = tpu.matmul %2, %23, %cst_10 {dimension_numbers = #tpu.dot_dimension_numbers<[0], [0], [1], [1], [0, 1, 1, 1], [], []>} : vector<16x32xf32>, vector<16x128xf32>, vector<32x128xf32> -> vector<32x128xf32>
    %c0_11 = arith.constant 0 : index
    %c0_12 = arith.constant 0 : index
    %c0_13 = arith.constant 0 : index
    %25 = vector.load %arg4[%c0_11, %c0_12, %c0_13] : memref<1x32x128xf32, #tpu.memory_space<vmem>>, vector<1x32x128xf32>
    %26 = vector.shape_cast %25 : vector<1x32x128xf32> to vector<32x128xf32>
    %27 = vector.shape_cast %24 : vector<32x128xf32> to vector<1x32x128xf32>
    tpu.vector_store %arg4[%c0_11, %c0_12, %c0_13], %27 {strides = array<i32>} : memref<1x32x128xf32, #tpu.memory_space<vmem>>, vector<1x32x128xf32>,
    %c0_i32 = arith.constant 0 : i32
    %28 = arith.cmpi eq, %arg1, %c0_i32 : i32
    %29 = arith.extui %28 : i1 to i32
    %c0_i32_14 = arith.constant 0 : i32
    %30 = arith.cmpi ne, %29, %c0_i32_14 : i32
    scf.if %30 {
      %cst_42 = arith.constant 0.000000e+00 : f32
      %88 = vector.broadcast %cst_42 : f32 to vector<16x32xf32>
      %c0_43 = arith.constant 0 : index
      %c0_44 = arith.constant 0 : index
      %c0_45 = arith.constant 0 : index
      %89 = vector.load %arg5[%c0_43, %c0_44, %c0_45] : memref<1x16x32xf32, #tpu.memory_space<vmem>>, vector<1x16x32xf32>
      %90 = vector.shape_cast %89 : vector<1x16x32xf32> to vector<16x32xf32>
      %91 = vector.shape_cast %88 : vector<16x32xf32> to vector<1x16x32xf32>
      tpu.vector_store %arg5[%c0_43, %c0_44, %c0_45], %91 {strides = array<i32>} : memref<1x16x32xf32, #tpu.memory_space<vmem>>, vector<1x16x32xf32>,
      %cst_46 = arith.constant 0xFF800000 : f32
      %92 = vector.broadcast %cst_46 : f32 to vector<16x1xf32>
      %c0_47 = arith.constant 0 : index
      %c0_48 = arith.constant 0 : index
      %c0_49 = arith.constant 0 : index
      %93 = vector.load %arg6[%c0_47, %c0_48, %c0_49] : memref<1x16x1xf32, #tpu.memory_space<vmem>>, vector<1x16x1xf32>
      %94 = vector.shape_cast %93 : vector<1x16x1xf32> to vector<16x1xf32>
      %95 = vector.shape_cast %92 : vector<16x1xf32> to vector<1x16x1xf32>
      tpu.vector_store %arg6[%c0_47, %c0_48, %c0_49], %95 {strides = array<i32>} : memref<1x16x1xf32, #tpu.memory_space<vmem>>, vector<1x16x1xf32>,
      %cst_50 = arith.constant 0.000000e+00 : f32
      %96 = vector.broadcast %cst_50 : f32 to vector<16x1xf32>
      %c0_51 = arith.constant 0 : index
      %c0_52 = arith.constant 0 : index
      %c0_53 = arith.constant 0 : index
      %97 = vector.load %arg7[%c0_51, %c0_52, %c0_53] : memref<1x16x1xf32, #tpu.memory_space<vmem>>, vector<1x16x1xf32>
      %98 = vector.shape_cast %97 : vector<1x16x1xf32> to vector<16x1xf32>
      %99 = vector.shape_cast %96 : vector<16x1xf32> to vector<1x16x1xf32>
      tpu.vector_store %arg7[%c0_51, %c0_52, %c0_53], %99 {strides = array<i32>} : memref<1x16x1xf32, #tpu.memory_space<vmem>>, vector<1x16x1xf32>,
    } else {
    }
    %31 = tpu.iota {dimensions = array<i32: 0>} : vector<16x128xi32>
    %32 = vector.broadcast %5 : vector<1x128xf32> to vector<16x128xf32>
    %33 = arith.cmpf oeq, %3, %32 : vector<16x128xf32>
    %c16_i32 = arith.constant 16 : i32
    %34 = vector.broadcast %c16_i32 : i32 to vector<16x128xi32>
    %35 = arith.select %33, %31, %34 : vector<16x128xi1>, vector<16x128xi32>
    %cst_15 = arith.constant dense<2147483647> : vector<128xi32>
    %36 = vector.multi_reduction <minsi>, %35, %cst_15 [0] : vector<16x128xi32> to vector<128xi32>
    %37 = vector.shape_cast %36 : vector<128xi32> to vector<1x128xi32>
    %38 = vector.broadcast %37 : vector<1x128xi32> to vector<16x128xi32>
    %39 = arith.cmpi eq, %31, %38 : vector<16x128xi32>
    %40 = arith.extui %39 : vector<16x128xi1> to vector<16x128xi32>
    %41 = arith.sitofp %40 : vector<16x128xi32> to vector<16x128xf32>
    %cst_16 = arith.constant dense<0xFF800000> : vector<16xf32>
    %42 = vector.multi_reduction <maximumf>, %3, %cst_16 [1] : vector<16x128xf32> to vector<16xf32>
    %43 = vector.shape_cast %42 : vector<16xf32> to vector<16x1xf32>
    %c0_17 = arith.constant 0 : index
    %c0_18 = arith.constant 0 : index
    %c0_19 = arith.constant 0 : index
    %44 = vector.load %arg6[%c0_17, %c0_18, %c0_19] : memref<1x16x1xf32, #tpu.memory_space<vmem>>, vector<1x16x1xf32>
    %45 = vector.shape_cast %44 : vector<1x16x1xf32> to vector<16x1xf32>
    %46 = arith.maximumf %45, %43 : vector<16x1xf32>
    %c0_20 = arith.constant 0 : index
    %c0_21 = arith.constant 0 : index
    %c0_22 = arith.constant 0 : index
    %47 = vector.load %arg6[%c0_20, %c0_21, %c0_22] : memref<1x16x1xf32, #tpu.memory_space<vmem>>, vector<1x16x1xf32>
    %48 = vector.shape_cast %47 : vector<1x16x1xf32> to vector<16x1xf32>
    %49 = arith.subf %48, %46 : vector<16x1xf32>
    %50 = math.exp %49 : vector<16x1xf32>
    %51 = vector.broadcast %46 : vector<16x1xf32> to vector<16x128xf32>
    %52 = arith.mulf %41, %51 : vector<16x128xf32>
    %cst_23 = arith.constant dense<0.000000e+00> : vector<128xf32>
    %53 = vector.multi_reduction <add>, %52, %cst_23 [0] : vector<16x128xf32> to vector<128xf32>
    %54 = vector.shape_cast %53 : vector<128xf32> to vector<1x128xf32>
    %55 = arith.subf %5, %54 : vector<1x128xf32>
    %56 = math.exp %55 : vector<1x128xf32>
    %c128_i32 = arith.constant 128 : i32
    %57 = arith.muli %arg1, %c128_i32 : i32
    %58 = tpu.iota {dimensions = array<i32: 1>} : vector<1x128xi32>
    %59 = vector.broadcast %57 : i32 to vector<1x128xi32>
    %60 = arith.addi %59, %58 : vector<1x128xi32>
    %c64_i32 = arith.constant 64 : i32
    %61 = vector.broadcast %c64_i32 : i32 to vector<1x128xi32>
    %62 = arith.cmpi slt, %60, %61 : vector<1x128xi32>
    %cst_24 = arith.constant 0.000000e+00 : f32
    %63 = vector.broadcast %cst_24 : f32 to vector<1x128xf32>
    %64 = arith.select %62, %56, %63 : vector<1x128xi1>, vector<1x128xf32>
    %65 = vector.broadcast %64 : vector<1x128xf32> to vector<16x128xf32>
    %66 = arith.mulf %41, %65 : vector<16x128xf32>
    %c0_25 = arith.constant 0 : index
    %c0_26 = arith.constant 0 : index
    %c0_27 = arith.constant 0 : index
    %67 = vector.load %arg7[%c0_25, %c0_26, %c0_27] : memref<1x16x1xf32, #tpu.memory_space<vmem>>, vector<1x16x1xf32>
    %68 = vector.shape_cast %67 : vector<1x16x1xf32> to vector<16x1xf32>
    %69 = arith.mulf %68, %50 : vector<16x1xf32>
    %cst_28 = arith.constant dense<0xFF800000> : vector<16xf32>
    %70 = vector.multi_reduction <maximumf>, %66, %cst_28 [1] : vector<16x128xf32> to vector<16xf32>
    %71 = vector.shape_cast %70 : vector<16xf32> to vector<16x1xf32>
    %72 = arith.maximumf %69, %71 : vector<16x1xf32>
    %c0_29 = arith.constant 0 : index
    %c0_30 = arith.constant 0 : index
    %c0_31 = arith.constant 0 : index
    %73 = vector.load %arg7[%c0_29, %c0_30, %c0_31] : memref<1x16x1xf32, #tpu.memory_space<vmem>>, vector<1x16x1xf32>
    %74 = vector.shape_cast %73 : vector<1x16x1xf32> to vector<16x1xf32>
    %75 = vector.shape_cast %72 : vector<16x1xf32> to vector<1x16x1xf32>
    tpu.vector_store %arg7[%c0_29, %c0_30, %c0_31], %75 {strides = array<i32>} : memref<1x16x1xf32, #tpu.memory_space<vmem>>, vector<1x16x1xf32>,
    %c0_32 = arith.constant 0 : index
    %c0_33 = arith.constant 0 : index
    %c0_34 = arith.constant 0 : index
    %76 = vector.load %arg5[%c0_32, %c0_33, %c0_34] : memref<1x16x32xf32, #tpu.memory_space<vmem>>, vector<1x16x32xf32>
    %77 = vector.shape_cast %76 : vector<1x16x32xf32> to vector<16x32xf32>
    %78 = vector.broadcast %50 : vector<16x1xf32> to vector<16x32xf32>
    %79 = arith.mulf %77, %78 : vector<16x32xf32>
    %cst_35 = arith.constant dense<0.000000e+00> : vector<16x32xf32>
    %80 = tpu.matmul %66, %1, %cst_35 {dimension_numbers = #tpu.dot_dimension_numbers<[1], [1], [0], [0], [0, 0, 1, 0], [], []>} : vector<16x128xf32>, vector<32x128xf32>, vector<16x32xf32> -> vector<16x32xf32>
    %81 = arith.addf %79, %80 : vector<16x32xf32>
    %c0_36 = arith.constant 0 : index
    %c0_37 = arith.constant 0 : index
    %c0_38 = arith.constant 0 : index
    %82 = vector.load %arg5[%c0_36, %c0_37, %c0_38] : memref<1x16x32xf32, #tpu.memory_space<vmem>>, vector<1x16x32xf32>
    %83 = vector.shape_cast %82 : vector<1x16x32xf32> to vector<16x32xf32>
    %84 = vector.shape_cast %81 : vector<16x32xf32> to vector<1x16x32xf32>
    tpu.vector_store %arg5[%c0_36, %c0_37, %c0_38], %84 {strides = array<i32>} : memref<1x16x32xf32, #tpu.memory_space<vmem>>, vector<1x16x32xf32>,
    %c0_39 = arith.constant 0 : index
    %c0_40 = arith.constant 0 : index
    %c0_41 = arith.constant 0 : index
    %85 = vector.load %arg6[%c0_39, %c0_40, %c0_41] : memref<1x16x1xf32, #tpu.memory_space<vmem>>, vector<1x16x1xf32>
    %86 = vector.shape_cast %85 : vector<1x16x1xf32> to vector<16x1xf32>
    %87 = vector.shape_cast %46 : vector<16x1xf32> to vector<1x16x1xf32>
    tpu.vector_store %arg6[%c0_39, %c0_40, %c0_41], %87 {strides = array<i32>} : memref<1x16x1xf32, #tpu.memory_space<vmem>>, vector<1x16x1xf32>,
    return
  }
  func.func @transform_0(%arg0: i32, %arg1: i32) -> (i32, i32, i32) {
    %c0_i32 = arith.constant 0 : i32
    %c0_i32_0 = arith.constant 0 : i32
    return %arg0, %c0_i32, %arg1 : i32, i32, i32
  }
  func.func @transform_1(%arg0: i32, %arg1: i32) -> (i32, i32) {
    %c0_i32 = arith.constant 0 : i32
    %c0_i32_0 = arith.constant 0 : i32
    %c0_i32_1 = arith.constant 0 : i32
    return %c0_i32, %c0_i32_0 : i32, i32
  }
  func.func @transform_2(%arg0: i32, %arg1: i32) -> (i32, i32, i32) {
    %c0_i32 = arith.constant 0 : i32
    %c0_i32_0 = arith.constant 0 : i32
    return %arg0, %c0_i32, %arg1 : i32, i32, i32
  }
  func.func @transform_3(%arg0: i32, %arg1: i32) -> (i32, i32, i32) {
    %c0_i32 = arith.constant 0 : i32
    %c0_i32_0 = arith.constant 0 : i32
    %c0_i32_1 = arith.constant 0 : i32
    return %arg0, %c0_i32, %c0_i32_0 : i32, i32, i32
  }
  func.func @transform_4(%arg0: i32, %arg1: i32) -> (i32, i32, i32) {
    %c0_i32 = arith.constant 0 : i32
    %c0_i32_0 = arith.constant 0 : i32
    %c0_i32_1 = arith.constant 0 : i32
    return %arg0, %c0_i32, %c0_i32_0 : i32, i32, i32
  }
  func.func @transform_5(%arg0: i32, %arg1: i32) -> (i32, i32, i32) {
    %c0_i32 = arith.constant 0 : i32
    %c0_i32_0 = arith.constant 0 : i32
    %c0_i32_1 = arith.constant 0 : i32
    return %arg0, %c0_i32, %c0_i32_0 : i32, i32, i32
  }
}

</mosaic_0001>

<llo_original>
// kernel: block_memory_forward.1
$region0: #{block_memory_forward.1}
  #allocation0 [shape = 'u32[]', space=smem, size = 0x4, offset = 0x4, fixed_abs, tag = 'smem constant byte address 0x4 - core index']
  #allocation1 [shape = 'u32[72,128]{1,0:T(1,128)}', space=vmem, size = 0x9000, scoped, tag = 'internal scratch']
  %s0 = inlined_call_operand.vmem [shape: f32[2,32,128], index: 0, kind: input, shape index: {}]
  %s1 = inlined_call_operand.vmem [shape: f32[16,32], index: 1, kind: input, shape index: {}]
  %s2 = inlined_call_operand.vmem [shape: f32[2,32,128], index: 2, kind: output, shape index: {0}]
  %s3 = inlined_call_operand.vmem [shape: f32[2,16,32], index: 3, kind: output, shape index: {1}]
  %s4 = inlined_call_operand.vmem [shape: f32[2,16,1], index: 4, kind: output, shape index: {2}]
  %s5 = inlined_call_operand.vmem [shape: f32[2,16,1], index: 5, kind: output, shape index: {3}]
  %6 = xla_tuple %s2, %s3, %s4, %s5
  %s7 = sld [smem:[#allocation0]]
  $region69: #{block_memory_forward.1} parent=0
    _
  %s9 = ssub.s32 1, %s7
  %s10 = scalar_select 0, %s9, %s7
  loop: start=0, step=1, limit=4
  $region2: #{block_memory_forward.1} parent=0 // loop_pre_header
    _
  $region3: #{block_memory_forward.1} parent=0 // loop_header
    %s12 = sphi 0, %s16
    %p13 = scmp.ge.s32.totalorder %s12, 4
    %s19 = sphi 0, %s31
    %s20 = sphi 0, %s27
    %s21 = sphi 0, %s19
    %s22 = sphi 0, %s20
    %s23 = sphi 0, %s21
    %s24 = sphi 0, %s22
    %s36 = sphi 0, %s38
    %s39 = sphi 0, %s36
    %s40 = sphi 0, %s39
    %s56 = sphi 0, %s40
    %s60 = sphi 0, %s60
    %s62 = sphi 0, %s60
    %s63 = sphi 0, %s62
    %s77 = sphi 0, %s63
    %s85 = sphi 0, %s87
    %s88 = sphi 0, %s85
    %s89 = sphi 0, %s88
    %s105 = sphi 0, %s89
    %s111 = sphi 0, %s113
    %s114 = sphi 0, %s111
    %s115 = sphi 0, %s114
    %s131 = sphi 0, %s115
    %s137 = sphi 0, %s139
    %s140 = sphi 0, %s137
    %s141 = sphi 0, %s140
    %s157 = sphi 0, %s141
    %s163 = sphi 0, %s165
    %s166 = sphi 0, %s163
    %s167 = sphi 0, %s166
    %s183 = sphi 0, %s167
  $region4: #{block_memory_forward.1} parent=0 // loop_header_branch
    %15 = sbr.rel (%p13) target = $region8
  $region5: #{block_memory_forward.1} parent=0 // loop_body
    %s17 = ssub.s32 %s12, 1
    %s18 = ssub.s32 %s12, 2
    %s25 = sadd.s32 1, %s20
    %p26 = scmp.ge.s32.totalorder %s25, 1
    %s27 = scalar_select %p26, 0, %s25
    %s28 = sadd.s32 1, %s19
    %s29 = scalar_select %p26, %s28, %s19
    %p30 = scmp.ge.s32.totalorder %s29, 2
    %s31 = scalar_select %p30, 0, %s29
    %s32 = ssub.s32 %s19, %s31
    %s33 = ssub.s32 %s20, %s27
    %s34 = sor.u32 %s32, %s33
    %p35 = scmp.eq.s32.totalorder %s34, 0
    %s37 = sadd.s32 %s36, 1
    %s38 = scalar_select %p35, %s36, %s37
    %p41 = pneg %p35
    %p42 = scmp.eq.s32.totalorder %s12, 1
    %p43 = por %p41, %p42
    %p44 = scmp.ne.s32.totalorder %s36, %s39
    %p45 = scmp.eq.s32.totalorder %s12, 0
    %p46 = por %p44, %p45
    %p47 = scmp.ne.s32.totalorder %s36, %s39
    %p48 = scmp.eq.s32.totalorder %s17, 1
    %p49 = por %p47, %p48
    %p50 = scmp.ne.s32.totalorder %s39, %s40
    %p51 = scmp.eq.s32.totalorder %s17, 0
    %p52 = por %p50, %p51
    %p53 = scmp.ne.s32.totalorder %s39, %s40
    %p54 = scmp.eq.s32.totalorder %s18, 1
    %p55 = por %p53, %p54
    %p57 = scmp.ne.s32.totalorder %s40, %s56
    %p58 = scmp.eq.s32.totalorder %s18, 0
    %p59 = por %p57, %p58
    %s61 = sadd.s32 %s60, 1
    %p64 = scmp.eq.s32.totalorder %s12, 1
    %p65 = scmp.ne.s32.totalorder %s60, %s62
    %p66 = scmp.eq.s32.totalorder %s12, 0
    %p67 = por %p65, %p66
    %p68 = scmp.ne.s32.totalorder %s60, %s62
    %p69 = scmp.eq.s32.totalorder %s17, 1
    %p70 = por %p68, %p69
    %p71 = scmp.ne.s32.totalorder %s62, %s63
    %p72 = scmp.eq.s32.totalorder %s17, 0
    %p73 = por %p71, %p72
    %p74 = scmp.ne.s32.totalorder %s62, %s63
    %p75 = scmp.eq.s32.totalorder %s18, 1
    %p76 = por %p74, %p75
    %p78 = scmp.ne.s32.totalorder %s63, %s77
    %p79 = scmp.eq.s32.totalorder %s18, 0
    %p80 = por %p78, %p79
    %s81 = ssub.s32 %s19, %s31
    %s82 = ssub.s32 %s20, %s27
    %s83 = sor.u32 %s81, %s82
    %p84 = scmp.eq.s32.totalorder %s83, 0
    %s86 = sadd.s32 %s85, 1
    %s87 = scalar_select %p84, %s85, %s86
    %p90 = pneg %p84
    %p91 = scmp.eq.s32.totalorder %s12, 1
    %p92 = por %p90, %p91
    %p93 = scmp.ne.s32.totalorder %s85, %s88
    %p94 = scmp.eq.s32.totalorder %s12, 0
    %p95 = por %p93, %p94
    %p96 = scmp.ne.s32.totalorder %s85, %s88
    %p97 = scmp.eq.s32.totalorder %s17, 1
    %p98 = por %p96, %p97
    %p99 = scmp.ne.s32.totalorder %s88, %s89
    %p100 = scmp.eq.s32.totalorder %s17, 0
    %p101 = por %p99, %p100
    %p102 = scmp.ne.s32.totalorder %s88, %s89
    %p103 = scmp.eq.s32.totalorder %s18, 1
    %p104 = por %p102, %p103
    %p106 = scmp.ne.s32.totalorder %s89, %s105
    %p107 = scmp.eq.s32.totalorder %s18, 0
    %p108 = por %p106, %p107
    %s109 = ssub.s32 %s19, %s31
    %p110 = scmp.eq.s32.totalorder %s109, 0
    %s112 = sadd.s32 %s111, 1
    %s113 = scalar_select %p110, %s111, %s112
    %p116 = pneg %p110
    %p117 = scmp.eq.s32.totalorder %s12, 1
    %p118 = por %p116, %p117
    %p119 = scmp.ne.s32.totalorder %s111, %s114
    %p120 = scmp.eq.s32.totalorder %s12, 0
    %p121 = por %p119, %p120
    %p122 = scmp.ne.s32.totalorder %s111, %s114
    %p123 = scmp.eq.s32.totalorder %s17, 1
    %p124 = por %p122, %p123
    %p125 = scmp.ne.s32.totalorder %s114, %s115
    %p126 = scmp.eq.s32.totalorder %s17, 0
    %p127 = por %p125, %p126
    %p128 = scmp.ne.s32.totalorder %s114, %s115
    %p129 = scmp.eq.s32.totalorder %s18, 1
    %p130 = por %p128, %p129
    %p132 = scmp.ne.s32.totalorder %s115, %s131
    %p133 = scmp.eq.s32.totalorder %s18, 0
    %p134 = por %p132, %p133
    %s135 = ssub.s32 %s19, %s31
    %p136 = scmp.eq.s32.totalorder %s135, 0
    %s138 = sadd.s32 %s137, 1
    %s139 = scalar_select %p136, %s137, %s138
    %p142 = pneg %p136
    %p143 = scmp.eq.s32.totalorder %s12, 1
    %p144 = por %p142, %p143
    %p145 = scmp.ne.s32.totalorder %s137, %s140
    %p146 = scmp.eq.s32.totalorder %s12, 0
    %p147 = por %p145, %p146
    %p148 = scmp.ne.s32.totalorder %s137, %s140
    %p149 = scmp.eq.s32.totalorder %s17, 1
    %p150 = por %p148, %p149
    %p151 = scmp.ne.s32.totalorder %s140, %s141
    %p152 = scmp.eq.s32.totalorder %s17, 0
    %p153 = por %p151, %p152
    %p154 = scmp.ne.s32.totalorder %s140, %s141
    %p155 = scmp.eq.s32.totalorder %s18, 1
    %p156 = por %p154, %p155
    %p158 = scmp.ne.s32.totalorder %s141, %s157
    %p159 = scmp.eq.s32.totalorder %s18, 0
    %p160 = por %p158, %p159
    %s161 = ssub.s32 %s19, %s31
    %p162 = scmp.eq.s32.totalorder %s161, 0
    %s164 = sadd.s32 %s163, 1
    %s165 = scalar_select %p162, %s163, %s164
    %p168 = pneg %p162
    %p169 = scmp.eq.s32.totalorder %s12, 1
    %p170 = por %p168, %p169
    %p171 = scmp.ne.s32.totalorder %s163, %s166
    %p172 = scmp.eq.s32.totalorder %s12, 0
    %p173 = por %p171, %p172
    %p174 = scmp.ne.s32.totalorder %s163, %s166
    %p175 = scmp.eq.s32.totalorder %s17, 1
    %p176 = por %p174, %p175
    %p177 = scmp.ne.s32.totalorder %s166, %s167
    %p178 = scmp.eq.s32.totalorder %s17, 0
    %p179 = por %p177, %p178
    %p180 = scmp.ne.s32.totalorder %s166, %s167
    %p181 = scmp.eq.s32.totalorder %s18, 1
    %p182 = por %p180, %p181
    %p184 = scmp.ne.s32.totalorder %s167, %s183
    %p185 = scmp.eq.s32.totalorder %s18, 0
    %p186 = por %p184, %p185
    %p187 = scmp.le.s32.totalorder 1, %s12
    %p188 = scmp.lt.s32.totalorder %s12, 3
    %p189 = pnand %p187, %p188
    %p190 = pneg %p189
    // Predicated region
    $region9: #{block_memory_forward.1} parent=5 // pred_check
      _
    $region10: #{block_memory_forward.1} parent=5 // pred_check_branch
      %192 = sbr.rel (%p189) target = $region12
    $region11: #{block_memory_forward.1} parent=5 // pred_region
      %s193 = ssub.s32 %s12, 1
      // Predicated region
      $region13: #{block_memory_forward.1} parent=11 // pred_check
        %p194 = pneg %p73
      $region14: #{block_memory_forward.1} parent=11 // pred_check_branch
        %196 = sbr.rel (%p194) target = $region16
      $region15: #{block_memory_forward.1} parent=11 // pred_region
        _
      $region16: #{block_memory_forward.1} parent=11 // pred_fallthru
        _
    $region12: #{block_memory_forward.1} parent=5 // pred_fallthru
      _
    %p197 = scmp.lt.s32.totalorder %s12, 2
    // Predicated region
    $region17: #{block_memory_forward.1} parent=5 // pred_check
      %p198 = pneg %p197
    $region18: #{block_memory_forward.1} parent=5 // pred_check_branch
      %200 = sbr.rel (%p198) target = $region20
    $region19: #{block_memory_forward.1} parent=5 // pred_region
      // Predicated region
      $region21: #{block_memory_forward.1} parent=19 // pred_check
        %p201 = pneg %p46
      $region22: #{block_memory_forward.1} parent=19 // pred_check_branch
        %203 = sbr.rel (%p201) target = $region24
      $region23: #{block_memory_forward.1} parent=19 // pred_region
        %p204 = scmp.lt.s32.totalorder %s19, 1
        %s205 = scalar_select %p204, %s19, 1
        %p206 = scmp.lt.s32.totalorder %s20, 0
        %s207 = scalar_select %p206, %s20, 0
        %s208 = smul.addr %s205, 4
        %s209 = sadd.s32 %s207, %s208
        %s210 = smul.addr %s209, 8
        %s211 = scalar_lea.vmem %s0, %s210
      $region24: #{block_memory_forward.1} parent=19 // pred_fallthru
        _
    $region20: #{block_memory_forward.1} parent=5 // pred_fallthru
      _
    %p212 = scmp.le.s32.totalorder 1, %s12
    %p213 = scmp.lt.s32.totalorder %s12, 3
    %p214 = pnand %p212, %p213
    %p215 = pneg %p214
    // Predicated region
    $region25: #{block_memory_forward.1} parent=5 // pred_check
      _
    $region26: #{block_memory_forward.1} parent=5 // pred_check_branch
      %217 = sbr.rel (%p214) target = $region28
    $region27: #{block_memory_forward.1} parent=5 // pred_region
      %s218 = ssub.s32 %s12, 1
      %p219 = scmp.lt.s32.totalorder %s21, 1
      %s220 = scalar_select %p219, %s21, 1
      %p221 = scmp.lt.s32.totalorder %s22, 0
      %s222 = scalar_select %p221, %s22, 0
      %s223 = smul.addr %s220, 4
      %s224 = sadd.s32 %s222, %s223
      %s225 = smul.addr %s224, 8
      %s226 = scalar_lea.vmem %s0, %s225
      %p227 = pneg %p52
      %p228 = pneg %p49
      %p229 = pneg %p73
      %p230 = pneg %p70
      %p231 = pneg %p101
      %p232 = pneg %p98
      %p233 = scmp.lt.s32.totalorder %s21, 1
      %s234 = scalar_select %p233, %s21, 1
      %p235 = scmp.lt.s32.totalorder %s22, 0
      %s236 = scalar_select %p235, %s22, 0
      %s237 = smul.addr %s234, 4
      %s238 = sadd.s32 %s236, %s237
      %s239 = smul.addr %s238, 8
      %s240 = scalar_lea.vmem %s2, %s239
      %p241 = pneg %p127
      %p242 = pneg %p124
      %p243 = scmp.lt.s32.totalorder %s21, 1
      %s244 = scalar_select %p243, %s21, 1
      %s245 = smul.addr %s244, 2
      %s246 = smul.addr %s245, 8
      %s247 = scalar_lea.vmem %s3, %s246
      %p248 = pneg %p153
      %p249 = pneg %p150
      %p250 = scmp.lt.s32.totalorder %s21, 1
      %s251 = scalar_select %p250, %s21, 1
      %s252 = smul.addr %s251, 2
      %s253 = smul.addr %s252, 8
      %s254 = scalar_lea.vmem %s4, %s253
      %p255 = pneg %p179
      %p256 = pneg %p176
      %p257 = scmp.lt.s32.totalorder %s21, 1
      %s258 = scalar_select %p257, %s21, 1
      %s259 = smul.addr %s258, 2
      %s260 = smul.addr %s259, 8
      %s261 = scalar_lea.vmem %s5, %s260
      %p262 = scmp.lt.s32.totalorder %s21, 1
      %s263 = scalar_select %p262, %s21, 1
      %p264 = scmp.lt.s32.totalorder %s22, 0
      %s265 = scalar_select %p264, %s22, 0
      %s266 = smul.addr %s263, 4
      %s267 = sadd.s32 %s265, %s266
      %s268 = smul.addr %s267, 8
      %s269 = scalar_lea.vmem %s0, %s268
      %p270 = scmp.lt.s32.totalorder %s21, 1
      %s271 = scalar_select %p270, %s21, 1
      %p272 = scmp.lt.s32.totalorder %s22, 0
      %s273 = scalar_select %p272, %s22, 0
      %s274 = smul.addr %s271, 4
      %s275 = sadd.s32 %s273, %s274
      %s276 = smul.addr %s275, 8
      %s277 = scalar_lea.vmem %s2, %s276
      %p278 = scmp.lt.s32.totalorder %s21, 1
      %s279 = scalar_select %p278, %s21, 1
      %s280 = smul.addr %s279, 2
      %s281 = smul.addr %s280, 8
      %s282 = scalar_lea.vmem %s3, %s281
      %p283 = scmp.lt.s32.totalorder %s21, 1
      %s284 = scalar_select %p283, %s21, 1
      %s285 = smul.addr %s284, 2
      %s286 = smul.addr %s285, 8
      %s287 = scalar_lea.vmem %s4, %s286
      %p288 = scmp.lt.s32.totalorder %s21, 1
      %s289 = scalar_select %p288, %s21, 1
      %s290 = smul.addr %s289, 2
      %s291 = smul.addr %s290, 8
      %s292 = scalar_lea.vmem %s5, %s291
      %v293 = vld [vmem:[%s269] sm:$0xff]
      %v294 = vld [vmem:[%s269 + $0x8] sm:$0xff]
      %v295 = vld [vmem:[%s269 + $0x10] sm:$0xff]
      %v296 = vld [vmem:[%s269 + $0x18] sm:$0xff]
      %v297 = vld [vmem:[%s1] sm:$0xff]
      %v298 = vld [vmem:[%s1 + $0x8] sm:$0xff]
      %vm299 = vcmask 261120
      %v301 = vsel %vm299, %v297, 0
      %v304 = vsel %vm299, %v298, 0
      %306 = vmatpush.msra.mxu0 0.0
      %307 = vmatpush.msra.mxu0 0.0
      %308 = vmatpush.msra.mxu0 0.0
      %309 = vmatpush.msra.mxu0 0.0
      %310 = vmatpush.msra.mxu0 0.0
      %311 = vmatpush.msra.mxu0 0.0
      %312 = vmatpush.msra.mxu0 0.0
      %313 = vmatpush.msra.mxu0 0.0
      %314 = vmatpush.msra.mxu0 0.0
      %315 = vmatpush.msra.mxu0 0.0
      %316 = vmatpush.msra.mxu0 0.0
      %317 = vmatpush.msra.mxu0 0.0
      %318 = vmatpush.msra.mxu0 %v296
      %319 = vmatpush.msra.mxu0 %v295
      %320 = vmatpush.msra.mxu0 %v294
      %321 = vmatpush.msra.mxu0 %v293
      %322 = vmatmul.f32.gmra.mxu0 %v301
      %v323 = vpop.f32.mrf.mxu0
      %v324 = vadd.f32 0.0, %v323
      %325 = vmatmul.f32.gmra.mxu0 %v304
      %v326 = vpop.f32.mrf.mxu0
      %v327 = vadd.f32 0.0, %v326
      %328 = vdwg.mxu0
      %v329 = vmax.f32 %v324, %v327
      %v330 = vrot.slane %v329, 4
      %v331 = vmax.f32 %v329, %v330
      %v332 = vrot.slane %v331, 2
      %v333 = vmax.f32 %v331, %v332
      %v334 = vrot.slane %v333, 1
      %v335 = vmax.f32 %v333, %v334
      %v336 = vsub.f32 %v324, %v335
      %v337 = vsub.f32 %v327, %v335
      %v338 = vmul.f32 %v336, 1.442695
      %v339 = vpow.pop %v338
      %v340 = vmul.f32 %v337, 1.442695
      %v341 = vpow.pop %v340
      %v342 = vadd.f32 %v339, %v341
      %v343 = vrot.slane %v342, 4
      %v344 = vadd.f32 %v342, %v343
      %v345 = vrot.slane %v344, 2
      %v346 = vadd.f32 %v344, %v345
      %v347 = vrot.slane %v346, 1
      %v348 = vadd.f32 %v346, %v347
      %v349 = vmul.f32 %v348, 0.0625
      %vm350 = vcmp.ge.f32.partialorder %v339, %v349
      %vm351 = vcmp.ge.f32.partialorder %v341, %v349
      %v352 = vsel %vm350, %v339, 0.0
      %v353 = vsel %vm351, %v341, 0.0
      %v354 = vadd.f32 %v352, %v353
      %v355 = vrot.slane %v354, 4
      %v356 = vadd.f32 %v354, %v355
      %v357 = vrot.slane %v356, 2
      %v358 = vadd.f32 %v356, %v357
      %v359 = vrot.slane %v358, 1
      %v360 = vadd.f32 %v358, %v359
      %v361 = vmax.f32 %v360, 1e-12
      %v362 = vrcp.pop %v361
      %v363 = vmul.f32 %v352, %v362
      %v364 = vmul.f32 %v353, %v362
      %365 = vxpose.xlu0.b32.start [1/16] %v297, 128
      %366 = vxpose.xlu0.b32.cont [2/16] %v298, 128
      %367 = vxpose.xlu0.b32.cont [3/16] 0.0, 128
      %368 = vxpose.xlu0.b32.cont [4/16] 0.0, 128
      %369 = vxpose.xlu0.b32.cont [5/16] 0.0, 128
      %370 = vxpose.xlu0.b32.cont [6/16] 0.0, 128
      %371 = vxpose.xlu0.b32.cont [7/16] 0.0, 128
      %372 = vxpose.xlu0.b32.cont [8/16] 0.0, 128
      %373 = vxpose.xlu0.b32.cont [9/16] 0.0, 128
      %374 = vxpose.xlu0.b32.cont [10/16] 0.0, 128
      %375 = vxpose.xlu0.b32.cont [11/16] 0.0, 128
      %376 = vxpose.xlu0.b32.cont [12/16] 0.0, 128
      %377 = vxpose.xlu0.b32.cont [13/16] 0.0, 128
      %378 = vxpose.xlu0.b32.cont [14/16] 0.0, 128
      %379 = vxpose.xlu0.b32.cont [15/16] 0.0, 128
      %380 = vxpose.xlu0.b32.end [16/16] 0.0, 128
      %v381 = vpop.trf.xlu0
      %v382 = vpop.trf.xlu0
      %v383 = vpop.trf.xlu0
      %v384 = vpop.trf.xlu0
      %v385 = vpop.trf.xlu0
      %v386 = vpop.trf.xlu0
      %v387 = vpop.trf.xlu0
      %v388 = vpop.trf.xlu0
      %v389 = vpop.trf.xlu0
      %v390 = vpop.trf.xlu0
      %v391 = vpop.trf.xlu0
      %v392 = vpop.trf.xlu0
      %v393 = vpop.trf.xlu0
      %v394 = vpop.trf.xlu0
      %v395 = vpop.trf.xlu0
      %v396 = vpop.trf.xlu0
      %vm397 = vcmask 130048
      %v399 = vsel %vm397, %v381, 0
      %v402 = vsel %vm397, %v382, 0
      %v405 = vsel %vm397, %v383, 0
      %v408 = vsel %vm397, %v384, 0
      %410 = vmatpush.msra.mxu0 0.0
      %411 = vmatpush.msra.mxu0 0.0
      %412 = vmatpush.msra.mxu0 0.0
      %413 = vmatpush.msra.mxu0 0.0
      %414 = vmatpush.msra.mxu0 0.0
      %415 = vmatpush.msra.mxu0 0.0
      %416 = vmatpush.msra.mxu0 0.0
      %417 = vmatpush.msra.mxu0 0.0
      %418 = vmatpush.msra.mxu0 0.0
      %419 = vmatpush.msra.mxu0 0.0
      %420 = vmatpush.msra.mxu0 0.0
      %421 = vmatpush.msra.mxu0 0.0
      %422 = vmatpush.msra.mxu0 0.0
      %423 = vmatpush.msra.mxu0 0.0
      %424 = vmatpush.msra.mxu0 %v364
      %425 = vmatpush.msra.mxu0 %v363
      %426 = vmatmul.f32.gmra.mxu0 %v399
      %v427 = vpop.f32.mrf.mxu0
      %v428 = vadd.f32 0.0, %v427
      %429 = vmatmul.f32.gmra.mxu0 %v402
      %v430 = vpop.f32.mrf.mxu0
      %v431 = vadd.f32 0.0, %v430
      %432 = vmatmul.f32.gmra.mxu0 %v405
      %v433 = vpop.f32.mrf.mxu0
      %v434 = vadd.f32 0.0, %v433
      %435 = vmatmul.f32.gmra.mxu0 %v408
      %v436 = vpop.f32.mrf.mxu0
      %v437 = vadd.f32 0.0, %v436
      %438 = vdwg.mxu0
      %439 = vst [vmem:[%s277] sm:$0xff] %v428
      %440 = vst [vmem:[%s277 + $0x8] sm:$0xff] %v431
      %441 = vst [vmem:[%s277 + $0x10] sm:$0xff] %v434
      %442 = vst [vmem:[%s277 + $0x18] sm:$0xff] %v437
      %p443 = scmp.eq.s32.totalorder %s22, 0
      // Predicated region
      $region29: #{block_memory_forward.1} parent=27 // pred_check
        %p444 = pneg %p443
      $region30: #{block_memory_forward.1} parent=27 // pred_check_branch
        %446 = sbr.rel (%p444) target = $region32
      $region31: #{block_memory_forward.1} parent=27 // pred_region
        %447 = vst.msk [vmem:[%s282] sm:$0xff] %vm299, 0.0
        %448 = vst.msk [vmem:[%s282 + $0x8] sm:$0xff] %vm299, 0.0
        %vm449 = vcmask 7168
        %450 = vst.msk [vmem:[%s287] sm:$0xff] %vm449, -inf
        %451 = vst.msk [vmem:[%s287 + $0x8] sm:$0xff] %vm449, -inf
        %452 = vst.msk [vmem:[%s292] sm:$0xff] %vm449, 0.0
        %453 = vst.msk [vmem:[%s292 + $0x8] sm:$0xff] %vm449, 0.0
      $region32: #{block_memory_forward.1} parent=27 // pred_fallthru
        _
      %v454 = vlaneseq
      %v455 = vshrl.u32 %v454, 7
      %v456 = vadd.s32 %v455, 8
      %vm457 = vcmp.eq.f32.partialorder %v324, %v335
      %vm458 = vcmp.eq.f32.partialorder %v327, %v335
      %v459 = vsel %vm457, %v455, 16
      %v460 = vsel %vm458, %v456, 16
      %vm461 = vcmp.lt.s32.totalorder %v459, %v460
      %v462 = vsel %vm461, %v459, %v460
      %v463 = vrot.slane %v462, 4
      %vm464 = vcmp.lt.s32.totalorder %v462, %v463
      %v465 = vsel %vm464, %v462, %v463
      %v466 = vrot.slane %v465, 2
      %vm467 = vcmp.lt.s32.totalorder %v465, %v466
      %v468 = vsel %vm467, %v465, %v466
      %v469 = vrot.slane %v468, 1
      %vm470 = vcmp.lt.s32.totalorder %v468, %v469
      %v471 = vsel %vm470, %v468, %v469
      %vm472 = vcmp.eq.s32.totalorder %v455, %v471
      %vm473 = vcmp.eq.s32.totalorder %v456, %v471
      %v474 = vsel %vm472, 1, 0
      %v475 = vsel %vm473, 1, 0
      %v476 = vcvt.s32.f32 %v474
      %v477 = vcvt.s32.f32 %v475
      %478 = vmax.xlane.f32.xlu0 %v324
      %v479 = vpop.xlane.xlu0 %478
      %480 = vmax.xlane.f32.xlu0 %v327
      %v481 = vpop.xlane.xlu0 %480
      %v482 = vld [vmem:[%s287] sm:$0xff]
      %v483 = vld [vmem:[%s287 + $0x8] sm:$0xff]
      %v484 = vmax.f32 %v482, %v479
      %v485 = vmax.f32 %v483, %v481
      %v486 = vsub.f32 %v482, %v484
      %v487 = vsub.f32 %v483, %v485
      %v488 = vmul.f32 %v486, 1.442695
      %v489 = vpow.pop %v488
      %v490 = vmul.f32 %v487, 1.442695
      %v491 = vpow.pop %v490
      %493 = vset.pattern.permute.xlu0 0
      %494 = vperm.xlu0 %493, %v484
      %v495 = vpop.permute.xlu0 %494
      %498 = vset.pattern.permute.xlu0 0
      %499 = vperm.xlu0 %498, %v485
      %v500 = vpop.permute.xlu0 %499
      %v502 = vmul.f32 %v476, %v495
      %v503 = vmul.f32 %v477, %v500
      %v504 = vadd.f32 %v502, %v503
      %v505 = vrot.slane %v504, 4
      %v506 = vadd.f32 %v504, %v505
      %v507 = vrot.slane %v506, 2
      %v508 = vadd.f32 %v506, %v507
      %v509 = vrot.slane %v508, 1
      %v510 = vadd.f32 %v508, %v509
      %v511 = vsub.f32 %v335, %v510
      %v512 = vmul.f32 %v511, 1.442695
      %v513 = vpow.pop %v512
      %s514 = smul.u32 %s22, 128
      %v515 = vlaneseq
      %v516 = vand.u32 %v515, 127
      %v517 = vstv %s514
      %v518 = vadd.s32 %v517, %v516
      %vm519 = vcmp.lt.s32.totalorder %v518, 64
      %v520 = vsel %vm519, %v513, 0.0
      %v521 = vmul.f32 %v476, %v520
      %v522 = vmul.f32 %v477, %v520
      %v523 = vld [vmem:[%s292] sm:$0xff]
      %v524 = vld [vmem:[%s292 + $0x8] sm:$0xff]
      %v525 = vmul.f32 %v523, %v489
      %v526 = vmul.f32 %v524, %v491
      %527 = vmax.xlane.f32.xlu0 %v521
      %v528 = vpop.xlane.xlu0 %527
      %529 = vmax.xlane.f32.xlu0 %v522
      %v530 = vpop.xlane.xlu0 %529
      %v531 = vmax.f32 %v525, %v528
      %v532 = vmax.f32 %v526, %v530
      %vm533 = vcmask 7168
      %534 = vst.msk [vmem:[%s292] sm:$0xff] %vm533, %v531
      %535 = vst.msk [vmem:[%s292 + $0x8] sm:$0xff] %vm533, %v532
      %v536 = vld [vmem:[%s282] sm:$0xff]
      %v537 = vld [vmem:[%s282 + $0x8] sm:$0xff]
      %539 = vset.pattern.permute.xlu0 0
      %540 = vperm.xlu0 %539, %v489
      %v541 = vpop.permute.xlu0 %540
      %544 = vset.pattern.permute.xlu0 0
      %545 = vperm.xlu0 %544, %v491
      %v546 = vpop.permute.xlu0 %545
      %v548 = vmul.f32 %v536, %v541
      %v549 = vmul.f32 %v537, %v546
      %550 = vmatpush.xpose.msra.mxu0 0.0
      %551 = vmatpush.xpose.msra.mxu0 0.0
      %552 = vmatpush.xpose.msra.mxu0 0.0
      %553 = vmatpush.xpose.msra.mxu0 0.0
      %554 = vmatpush.xpose.msra.mxu0 0.0
      %555 = vmatpush.xpose.msra.mxu0 0.0
      %556 = vmatpush.xpose.msra.mxu0 0.0
      %557 = vmatpush.xpose.msra.mxu0 0.0
      %558 = vmatpush.xpose.msra.mxu0 0.0
      %559 = vmatpush.xpose.msra.mxu0 0.0
      %560 = vmatpush.xpose.msra.mxu0 0.0
      %561 = vmatpush.xpose.msra.mxu0 0.0
      %562 = vmatpush.xpose.msra.mxu0 %v296
      %563 = vmatpush.xpose.msra.mxu0 %v295
      %564 = vmatpush.xpose.msra.mxu0 %v294
      %565 = vmatpush.xpose.msra.mxu0 %v293
      %566 = vmatmul.f32.gmra.mxu0 %v521
      %v567 = vpop.f32.mrf.mxu0
      %v568 = vadd.f32 0.0, %v567
      %569 = vmatmul.f32.gmra.mxu0 %v522
      %v570 = vpop.f32.mrf.mxu0
      %v571 = vadd.f32 0.0, %v570
      %572 = vdwg.mxu0
      %v573 = vadd.f32 %v548, %v568
      %v574 = vadd.f32 %v549, %v571
      %575 = vst.msk [vmem:[%s282] sm:$0xff] %vm299, %v573
      %576 = vst.msk [vmem:[%s282 + $0x8] sm:$0xff] %vm299, %v574
      %577 = vst.msk [vmem:[%s287] sm:$0xff] %vm533, %v484
      %578 = vst.msk [vmem:[%s287 + $0x8] sm:$0xff] %vm533, %v485
      %p579 = scmp.lt.s32.totalorder %s21, 1
      %s580 = scalar_select %p579, %s21, 1
      %p581 = scmp.lt.s32.totalorder %s22, 0
      %s582 = scalar_select %p581, %s22, 0
      %s583 = smul.addr %s580, 4
      %s584 = sadd.s32 %s582, %s583
      %s585 = smul.addr %s584, 8
      %s586 = scalar_lea.vmem %s2, %s585
      %p587 = scmp.lt.s32.totalorder %s21, 1
      %s588 = scalar_select %p587, %s21, 1
      %s589 = smul.addr %s588, 2
      %s590 = smul.addr %s589, 8
      %s591 = scalar_lea.vmem %s3, %s590
      %p592 = scmp.lt.s32.totalorder %s21, 1
      %s593 = scalar_select %p592, %s21, 1
      %s594 = smul.addr %s593, 2
      %s595 = smul.addr %s594, 8
      %s596 = scalar_lea.vmem %s4, %s595
      %p597 = scmp.lt.s32.totalorder %s21, 1
      %s598 = scalar_select %p597, %s21, 1
      %s599 = smul.addr %s598, 2
      %s600 = smul.addr %s599, 8
      %s601 = scalar_lea.vmem %s5, %s600
      // Predicated region
      $region33: #{block_memory_forward.1} parent=27 // pred_check
        %p602 = pneg %p98
      $region34: #{block_memory_forward.1} parent=27 // pred_check_branch
        %604 = sbr.rel (%p602) target = $region36
      $region35: #{block_memory_forward.1} parent=27 // pred_region
        _
      $region36: #{block_memory_forward.1} parent=27 // pred_fallthru
        _
      // Predicated region
      $region37: #{block_memory_forward.1} parent=27 // pred_check
        %p605 = pneg %p124
      $region38: #{block_memory_forward.1} parent=27 // pred_check_branch
        %607 = sbr.rel (%p605) target = $region40
      $region39: #{block_memory_forward.1} parent=27 // pred_region
        _
      $region40: #{block_memory_forward.1} parent=27 // pred_fallthru
        _
      // Predicated region
      $region41: #{block_memory_forward.1} parent=27 // pred_check
        %p608 = pneg %p150
      $region42: #{block_memory_forward.1} parent=27 // pred_check_branch
        %610 = sbr.rel (%p608) target = $region44
      $region43: #{block_memory_forward.1} parent=27 // pred_region
        _
      $region44: #{block_memory_forward.1} parent=27 // pred_fallthru
        _
      // Predicated region
      $region45: #{block_memory_forward.1} parent=27 // pred_check
        %p611 = pneg %p176
      $region46: #{block_memory_forward.1} parent=27 // pred_check_branch
        %613 = sbr.rel (%p611) target = $region48
      $region47: #{block_memory_forward.1} parent=27 // pred_region
        _
      $region48: #{block_memory_forward.1} parent=27 // pred_fallthru
        _
    $region28: #{block_memory_forward.1} parent=5 // pred_fallthru
      _
    %p614 = scmp.le.s32.totalorder 2, %s12
    // Predicated region
    $region49: #{block_memory_forward.1} parent=5 // pred_check
      %p615 = pneg %p614
    $region50: #{block_memory_forward.1} parent=5 // pred_check_branch
      %617 = sbr.rel (%p615) target = $region52
    $region51: #{block_memory_forward.1} parent=5 // pred_region
      %s618 = ssub.s32 %s12, 2
      // Predicated region
      $region53: #{block_memory_forward.1} parent=51 // pred_check
        %p619 = pneg %p104
      $region54: #{block_memory_forward.1} parent=51 // pred_check_branch
        %621 = sbr.rel (%p619) target = $region56
      $region55: #{block_memory_forward.1} parent=51 // pred_region
        %p622 = scmp.lt.s32.totalorder %s23, 1
        %s623 = scalar_select %p622, %s23, 1
        %p624 = scmp.lt.s32.totalorder %s24, 0
        %s625 = scalar_select %p624, %s24, 0
        %s626 = smul.addr %s623, 4
        %s627 = sadd.s32 %s625, %s626
        %s628 = smul.addr %s627, 8
        %s629 = scalar_lea.vmem %s2, %s628
      $region56: #{block_memory_forward.1} parent=51 // pred_fallthru
        _
      // Predicated region
      $region57: #{block_memory_forward.1} parent=51 // pred_check
        %p630 = pneg %p130
      $region58: #{block_memory_forward.1} parent=51 // pred_check_branch
        %632 = sbr.rel (%p630) target = $region60
      $region59: #{block_memory_forward.1} parent=51 // pred_region
        %p633 = scmp.lt.s32.totalorder %s23, 1
        %s634 = scalar_select %p633, %s23, 1
        %s635 = smul.addr %s634, 2
        %s636 = smul.addr %s635, 8
        %s637 = scalar_lea.vmem %s3, %s636
      $region60: #{block_memory_forward.1} parent=51 // pred_fallthru
        _
      // Predicated region
      $region61: #{block_memory_forward.1} parent=51 // pred_check
        %p638 = pneg %p156
      $region62: #{block_memory_forward.1} parent=51 // pred_check_branch
        %640 = sbr.rel (%p638) target = $region64
      $region63: #{block_memory_forward.1} parent=51 // pred_region
        %p641 = scmp.lt.s32.totalorder %s23, 1
        %s642 = scalar_select %p641, %s23, 1
        %s643 = smul.addr %s642, 2
        %s644 = smul.addr %s643, 8
        %s645 = scalar_lea.vmem %s4, %s644
      $region64: #{block_memory_forward.1} parent=51 // pred_fallthru
        _
      // Predicated region
      $region65: #{block_memory_forward.1} parent=51 // pred_check
        %p646 = pneg %p182
      $region66: #{block_memory_forward.1} parent=51 // pred_check_branch
        %648 = sbr.rel (%p646) target = $region68
      $region67: #{block_memory_forward.1} parent=51 // pred_region
        %p649 = scmp.lt.s32.totalorder %s23, 1
        %s650 = scalar_select %p649, %s23, 1
        %s651 = smul.addr %s650, 2
        %s652 = smul.addr %s651, 8
        %s653 = scalar_lea.vmem %s5, %s652
      $region68: #{block_memory_forward.1} parent=51 // pred_fallthru
        _
    $region52: #{block_memory_forward.1} parent=5 // pred_fallthru
      _
  $region6: #{block_memory_forward.1} parent=0 // loop_footer
    %s16 = sadd.s32 1, %s12
  $region7: #{block_memory_forward.1} parent=0 // loop_footer_branch
    %11 = sbr.rel target = $region3
  $region8: #{block_memory_forward.1} parent=0 // loop_exit
    _

</llo_original>
